<compile_context>
chip_gen: v5e
topology: v5e:2x2
jax: 0.10.0
libtpu: 0.0.40
codegen_flags: <defaults>
</compile_context>

<pallas_src>
import jax
import jax.numpy as jnp
from jax import lax
from jax.experimental import pallas as pl
from jax.experimental.pallas import tpu as pltpu


def cfg_denoiser_kernel(sigma_ref, scales_ref,                  # SMEM scalars
                        z_ref, cc_cond_ref, cc_uncond_ref,      # VMEM (C, THW) activation tiles
                        ctx_cond_t_ref, ctx_uncond_t_ref,       # VMEM (D, S) contexts (transposed)
                        w_z_ref, w_cc_ref, wctx_ref, b_ref,     # VMEM padded params (f32)
                        out_ref):                               # VMEM (Cpad, THW) f32
    """Fused CFG denoiser, one HW tile per grid step.

    guided = out_uncond + t*(out_cond - out_img_cond) + i*(out_img_cond - out_uncond)
    For the linear stand-in inner model this folds to:
        c_in*(W_z @ z) + W_cc @ (c_in*i*cc_cond + c_in*(1-i)*cc_uncond)
        + Wctx @ (t*mean(ctx_cond) + (1-t)*mean(ctx_uncond)) + b
    with the activation mixing absorbed into the tiny weights (MXU does the mix).
    """
    sig = sigma_ref[0]
    t = scales_ref[0]
    i = scales_ref[1]
    c_in = lax.rsqrt(sig * sig + 1.0)                      # single EUP op

    act_dt = z_ref.dtype
    # CFG coefficients folded into the (Cpad, C) weights — scaling an 8x4 slab is
    # trivial vs. an elementwise pass over the (C, THW) activations.
    w_z_s  = (c_in * w_z_ref[...]).astype(act_dt)
    w_cc_c = ((c_in * i) * w_cc_ref[...]).astype(act_dt)
    w_cc_u = ((c_in * (1.0 - i)) * w_cc_ref[...]).astype(act_dt)

    y = (jnp.dot(w_z_s,  z_ref[...],        preferred_element_type=jnp.float32)
         + jnp.dot(w_cc_c, cc_cond_ref[...],   preferred_element_type=jnp.float32)
         + jnp.dot(w_cc_u, cc_uncond_ref[...], preferred_element_type=jnp.float32))  # (Cpad, THW) f32

    # Combined context bias: copies 1 and 2 share the uncond context, so only two
    # means are needed; bias b enters with total weight t + (i-t) + (1-i) = 1.
    ctx_mix = (t * jnp.mean(ctx_cond_t_ref[...], axis=1, keepdims=True)
               + (1.0 - t) * jnp.mean(ctx_uncond_t_ref[...], axis=1, keepdims=True))   # (D, 1)
    bias = jnp.dot(wctx_ref[...], ctx_mix, preferred_element_type=jnp.float32) + b_ref[...]  # (Cpad, 1)

    out_ref[...] = (y + bias).astype(out_ref.dtype)


def _pad_rows(a, rows):
    pad = rows - a.shape[0]
    return a if pad <= 0 else jnp.pad(a, ((0, pad), (0, 0)))


def _default_act_dtype():
    """bf16 MXU operands on v6e/v7x (native, halves HBM/VMEM bytes for the
    activation slabs); f32 on v5e and older (no bf16 VPU/EUP path)."""
    try:
        kind = jax.devices()[0].device_kind.lower()
    except Exception:
        return jnp.float32
    if any(g in kind for g in ("v2", "v3", "v4", "v5")):
        return jnp.float32
    return jnp.bfloat16


def prepare_params(params, latent_channels):
    """One-time parameter prep (hoisted out of the per-denoising-step path):
    split the 1x1-conv weight into its z / c_concat halves and pad all rows to a
    sublane-full (>=8) slab so the output stays lane-dense / unmasked."""
    w = params["w"].astype(jnp.float32)
    wctx = params["wctx"].astype(jnp.float32)
    b = params["b"].astype(jnp.float32)
    cout = int(w.shape[0])
    cpad = max(8, ((cout + 7) // 8) * 8)
    return {
        "w_z": _pad_rows(w[:, :latent_channels], cpad),     # (Cpad, C)
        "w_cc": _pad_rows(w[:, latent_channels:], cpad),    # (Cpad, C)
        "wctx": _pad_rows(wctx, cpad),                      # (Cpad, D)
        "b": _pad_rows(b, cpad),                            # (Cpad, 1)
        "cout": cout,
        "cpad": cpad,
    }


def cfg_denoiser(z, sigma, cond, uncond, text_cfg_scale, image_cfg_scale,
                 prepared, *, block_hw=None, act_dtype=None):
    """JAX wrapper reproducing CFGDenoiser.forward semantics.

    z      : f32[1, C, H, W]   (NCHW, like PyTorch)
    sigma  : f32[1]
    cond   : dict with 'c_crossattn' -> [f32[1, S, D]], 'c_concat' -> [f32[1, C, H, W]]
    uncond : same structure as cond
    prepared : output of prepare_params (padded/split inner-model weights)
    """
    _, C, H, W = z.shape
    HW = H * W
    cout, cpad = prepared["cout"], prepared["cpad"]

    if act_dtype is None:
        act_dtype = _default_act_dtype()
    if block_hw is None:
        block_hw = min(HW, 2048)          # cap tile; re-derived below via vmem_limit
    assert HW % 128 == 0, "HW must be lane-dense (multiple of 128)"
    assert HW % block_hw == 0 and block_hw % 128 == 0, (HW, block_hw)
    grid = (HW // block_hw,)

    # Only the distinct activations are materialized — no 3x repeat, no concat.
    z2 = z.reshape(C, HW).astype(act_dtype)
    cc_c = cond["c_concat"][0].reshape(C, HW).astype(act_dtype)
    cc_u = uncond["c_concat"][0].reshape(C, HW).astype(act_dtype)
    ctx_c_t = jnp.transpose(cond["c_crossattn"][0][0]).astype(jnp.float32)     # (D, S)
    ctx_u_t = jnp.transpose(uncond["c_crossattn"][0][0]).astype(jnp.float32)   # (D, S)
    D, S = ctx_c_t.shape

    sigma_f = sigma.reshape(-1).astype(jnp.float32)                            # (1,)
    scales = jnp.array([text_cfg_scale, image_cfg_scale], dtype=jnp.float32)   # (2,)

    # Explicit scoped-VMEM budget with headroom: 2x (double-buffer) for the tiled
    # activations/output, params + contexts, plus slack.  Capped at 48 MiB so it
    # stays inside v7x's 64 MiB physical VMEM.
    act_bytes = jnp.dtype(act_dtype).itemsize
    tiled_bytes = 2 * block_hw * (3 * C * act_bytes + cpad * 4)
    static_bytes = 4 * (2 * cpad * C + cpad * D + cpad + 2 * D * S)
    vmem_limit = int(min(max(2 * tiled_bytes + 2 * static_bytes + (2 << 20), 16 << 20),
                         48 << 20))

    act_spec = pl.BlockSpec((C, block_hw), lambda i: (0, i))

    def full_spec(shape):
        return pl.BlockSpec(shape, lambda i: (0, 0))   # constant block -> DMA'd once

    out = pl.pallas_call(
        cfg_denoiser_kernel,
        grid=grid,
        out_shape=jax.ShapeDtypeStruct((cpad, HW), jnp.float32),
        in_specs=[
            pl.BlockSpec(memory_space=pltpu.MemorySpace.SMEM),   # sigma (1,)
            pl.BlockSpec(memory_space=pltpu.MemorySpace.SMEM),   # scales (2,)
            act_spec,                                            # z
            act_spec,                                            # c_concat cond
            act_spec,                                            # c_concat uncond
            full_spec((D, S)),                                   # ctx cond (transposed)
            full_spec((D, S)),                                   # ctx uncond (transposed)
            full_spec((cpad, C)),                                # w_z
            full_spec((cpad, C)),                                # w_cc
            full_spec((cpad, D)),                                # wctx
            full_spec((cpad, 1)),                                # b
        ],
        out_specs=pl.BlockSpec((cpad, block_hw), lambda i: (0, i)),
        compiler_params=pltpu.CompilerParams(
            dimension_semantics=("parallel",),      # v7x: 2 TCs split the HW tiles
            vmem_limit_bytes=vmem_limit),
    )(sigma_f, scales, z2, cc_c, cc_u, ctx_c_t, ctx_u_t,
      prepared["w_z"], prepared["w_cc"], prepared["wctx"], prepared["b"])

    return out[:cout].reshape(1, cout, H, W)               # back to NCHW


# ------------------------- pure-JAX reference (for checking) -------------------------
# Keeps the original 3-copy formulation (repeat + concat + per-copy inner model +
# CFG combine) so the in-kernel algebraic folding is validated against the spec.
def cfg_denoiser_ref(z, sigma, cond, uncond, t_scale, i_scale, params):
    w, wctx, b = params["w"], params["wctx"], params["b"]
    _, C, H, W = z.shape
    cfg_z = jnp.repeat(z, 3, axis=0)
    cfg_sigma = jnp.repeat(sigma, 3, axis=0)
    ctx = jnp.concatenate(
        [cond["c_crossattn"][0], uncond["c_crossattn"][0], uncond["c_crossattn"][0]], axis=0)
    cc = jnp.concatenate(
        [cond["c_concat"][0], cond["c_concat"][0], uncond["c_concat"][0]], axis=0)
    zc = jnp.concatenate([cfg_z, cc], axis=1).reshape(3, 2 * C, H * W)
    c_in = 1.0 / jnp.sqrt(cfg_sigma[:, None, None] ** 2 + 1.0)
    y = jnp.einsum("oc,ncs->nos", w, zc * c_in)
    ctx_mean = ctx.mean(axis=1)                                   # (3, D)
    bias = jnp.einsum("od,nd->no", wctx, ctx_mean) + b[:, 0][None]
    inner = y + bias[:, :, None]                                  # (3, Cout, HW)
    out_cond, out_img_cond, out_uncond = inner[0], inner[1], inner[2]
    guided = out_uncond + t_scale * (out_cond - out_img_cond) + i_scale * (out_img_cond - out_uncond)
    return guided.reshape(1, w.shape[0], H, W)


if __name__ == "__main__":
    # Shapes consistent with the forward: batch=1 latent, C=4, 16x16 spatial,
    # cross-attn context seq=8, hidden=32.
    C, H, W, S, D = 4, 16, 16, 8, 32
    Cin, Cout = 2 * C, C

    key = jax.random.PRNGKey(0)
    kz, kcc, kucc, kca, kuca, ks = jax.random.split(key, 6)
    z = jax.random.normal(kz, (1, C, H, W), dtype=jnp.float32)
    sigma = jnp.abs(jax.random.normal(ks, (1,), dtype=jnp.float32)) + 0.5
    cond = {
        "c_crossattn": [jax.random.normal(kca, (1, S, D), dtype=jnp.float32)],
        "c_concat": [jax.random.normal(kcc, (1, C, H, W), dtype=jnp.float32)],
    }
    uncond = {
        "c_crossattn": [jax.random.normal(kuca, (1, S, D), dtype=jnp.float32)],
        "c_concat": [jax.random.normal(kucc, (1, C, H, W), dtype=jnp.float32)],
    }

    # Deterministic synthetic inner-model parameters.
    wkey = jax.random.PRNGKey(42)
    kw, kwc, kb = jax.random.split(wkey, 3)
    params = {
        "w": jax.random.normal(kw, (Cout, Cin), dtype=jnp.float32) * 0.2,
        "wctx": jax.random.normal(kwc, (Cout, D), dtype=jnp.float32) * 0.1,
        "b": jax.random.normal(kb, (Cout, 1), dtype=jnp.float32) * 0.05,
    }

    text_cfg_scale = 7.5
    image_cfg_scale = 1.5

    # One-time prep (would be done once per sampler, not per denoising step).
    prepared = prepare_params(params, C)
    act_dtype = _default_act_dtype()

    # block_hw=128 so the small test exercises the HW grid (HW=256 -> 2 tiles).
    out = cfg_denoiser(z, sigma, cond, uncond, text_cfg_scale, image_cfg_scale,
                       prepared, block_hw=128, act_dtype=act_dtype)
    out = jax.block_until_ready(out)

    ref = cfg_denoiser_ref(z, sigma, cond, uncond, text_cfg_scale, image_cfg_scale, params)
    tol = 1e-4 if jnp.dtype(act_dtype) == jnp.dtype(jnp.float32) else 5e-2
    assert out.shape == (1, Cout, H, W)
    assert jnp.allclose(out, ref, atol=tol, rtol=tol), "mismatch vs pure-JAX reference"

    print("KERNEL_OK")
</pallas_src>

<mosaic_0001>
module attributes {stable_mosaic.version = 11 : i64} {
  func.func @cfg_denoiser_kernel(%arg0: i32, %arg1: memref<1xf32, #tpu.memory_space<smem>>, %arg2: memref<2xf32, #tpu.memory_space<smem>>, %arg3: memref<4x128xbf16, #tpu.memory_space<vmem>>, %arg4: memref<4x128xbf16, #tpu.memory_space<vmem>>, %arg5: memref<4x128xbf16, #tpu.memory_space<vmem>>, %arg6: memref<32x8xf32, #tpu.memory_space<vmem>>, %arg7: memref<32x8xf32, #tpu.memory_space<vmem>>, %arg8: memref<8x4xf32, #tpu.memory_space<vmem>>, %arg9: memref<8x4xf32, #tpu.memory_space<vmem>>, %arg10: memref<8x32xf32, #tpu.memory_space<vmem>>, %arg11: memref<8x1xf32, #tpu.memory_space<vmem>>, %arg12: memref<8x128xf32, #tpu.memory_space<vmem>>) attributes {dimension_semantics = [#tpu.dimension_semantics<parallel>], iteration_bounds = array<i64: 2>, scalar_prefetch = 0 : i64, scratch_operands = 0 : i64, tpu.core_type = #tpu.core_type<tc>, window_params = [{transform_indices = @transform_0, window_bounds = array<i64: 1>}, {transform_indices = @transform_1, window_bounds = array<i64: 2>}, {transform_indices = @transform_2, window_bounds = array<i64: 4, 128>}, {transform_indices = @transform_3, window_bounds = array<i64: 4, 128>}, {transform_indices = @transform_4, window_bounds = array<i64: 4, 128>}, {pipeline_mode = #tpu.pipeline_mode<synchronous>, transform_indices = @transform_5, window_bounds = array<i64: 32, 8>}, {pipeline_mode = #tpu.pipeline_mode<synchronous>, transform_indices = @transform_6, window_bounds = array<i64: 32, 8>}, {pipeline_mode = #tpu.pipeline_mode<synchronous>, transform_indices = @transform_7, window_bounds = array<i64: 8, 4>}, {pipeline_mode = #tpu.pipeline_mode<synchronous>, transform_indices = @transform_8, window_bounds = array<i64: 8, 4>}, {pipeline_mode = #tpu.pipeline_mode<synchronous>, transform_indices = @transform_9, window_bounds = array<i64: 8, 32>}, {pipeline_mode = #tpu.pipeline_mode<synchronous>, transform_indices = @transform_10, window_bounds = array<i64: 8, 1>}, {transform_indices = @transform_11, window_bounds = array<i64: 8, 128>}]} {
    %c0 = arith.constant 0 : index
    %0 = memref.load %arg1[%c0] : memref<1xf32, #tpu.memory_space<smem>>
    %c0_0 = arith.constant 0 : index
    %1 = memref.load %arg2[%c0_0] : memref<2xf32, #tpu.memory_space<smem>>
    %c1 = arith.constant 1 : index
    %2 = memref.load %arg2[%c1] : memref<2xf32, #tpu.memory_space<smem>>
    %3 = arith.mulf %0, %0 : f32
    %cst = arith.constant 1.000000e+00 : f32
    %4 = arith.addf %3, %cst : f32
    %5 = math.rsqrt %4 : f32
    %c0_1 = arith.constant 0 : index
    %c0_2 = arith.constant 0 : index
    %6 = vector.load %arg8[%c0_1, %c0_2] : memref<8x4xf32, #tpu.memory_space<vmem>>, vector<8x4xf32>
    %7 = vector.broadcast %5 : f32 to vector<8x4xf32>
    %8 = arith.mulf %7, %6 : vector<8x4xf32>
    %9 = arith.truncf %8 : vector<8x4xf32> to vector<8x4xbf16>
    %10 = arith.mulf %5, %2 : f32
    %c0_3 = arith.constant 0 : index
    %c0_4 = arith.constant 0 : index
    %11 = vector.load %arg9[%c0_3, %c0_4] : memref<8x4xf32, #tpu.memory_space<vmem>>, vector<8x4xf32>
    %12 = vector.broadcast %10 : f32 to vector<8x4xf32>
    %13 = arith.mulf %12, %11 : vector<8x4xf32>
    %14 = arith.truncf %13 : vector<8x4xf32> to vector<8x4xbf16>
    %cst_5 = arith.constant 1.000000e+00 : f32
    %15 = arith.subf %cst_5, %2 : f32
    %16 = arith.mulf %5, %15 : f32
    %c0_6 = arith.constant 0 : index
    %c0_7 = arith.constant 0 : index
    %17 = vector.load %arg9[%c0_6, %c0_7] : memref<8x4xf32, #tpu.memory_space<vmem>>, vector<8x4xf32>
    %18 = vector.broadcast %16 : f32 to vector<8x4xf32>
    %19 = arith.mulf %18, %17 : vector<8x4xf32>
    %20 = arith.truncf %19 : vector<8x4xf32> to vector<8x4xbf16>
    %c0_8 = arith.constant 0 : index
    %c0_9 = arith.constant 0 : index
    %21 = vector.load %arg3[%c0_8, %c0_9] : memref<4x128xbf16, #tpu.memory_space<vmem>>, vector<4x128xbf16>
    %cst_10 = arith.constant dense<0.000000e+00> : vector<8x128xf32>
    %22 = tpu.matmul %9, %21, %cst_10 {dimension_numbers = #tpu.dot_dimension_numbers<[1], [0], [0], [1], [0, 0, 1, 1], [], []>} : vector<8x4xbf16>, vector<4x128xbf16>, vector<8x128xf32> -> vector<8x128xf32>
    %c0_11 = arith.constant 0 : index
    %c0_12 = arith.constant 0 : index
    %23 = vector.load %arg4[%c0_11, %c0_12] : memref<4x128xbf16, #tpu.memory_space<vmem>>, vector<4x128xbf16>
    %cst_13 = arith.constant dense<0.000000e+00> : vector<8x128xf32>
    %24 = tpu.matmul %14, %23, %cst_13 {dimension_numbers = #tpu.dot_dimension_numbers<[1], [0], [0], [1], [0, 0, 1, 1], [], []>} : vector<8x4xbf16>, vector<4x128xbf16>, vector<8x128xf32> -> vector<8x128xf32>
    %25 = arith.addf %22, %24 : vector<8x128xf32>
    %c0_14 = arith.constant 0 : index
    %c0_15 = arith.constant 0 : index
    %26 = vector.load %arg5[%c0_14, %c0_15] : memref<4x128xbf16, #tpu.memory_space<vmem>>, vector<4x128xbf16>
    %cst_16 = arith.constant dense<0.000000e+00> : vector<8x128xf32>
    %27 = tpu.matmul %20, %26, %cst_16 {dimension_numbers = #tpu.dot_dimension_numbers<[1], [0], [0], [1], [0, 0, 1, 1], [], []>} : vector<8x4xbf16>, vector<4x128xbf16>, vector<8x128xf32> -> vector<8x128xf32>
    %28 = arith.addf %25, %27 : vector<8x128xf32>
    %c0_17 = arith.constant 0 : index
    %c0_18 = arith.constant 0 : index
    %29 = vector.load %arg6[%c0_17, %c0_18] : memref<32x8xf32, #tpu.memory_space<vmem>>, vector<32x8xf32>
    %cst_19 = arith.constant dense<0.000000e+00> : vector<32xf32>
    %30 = vector.multi_reduction <add>, %29, %cst_19 [1] : vector<32x8xf32> to vector<32xf32>
    %31 = vector.shape_cast %30 : vector<32xf32> to vector<32x1xf32>
    %cst_20 = arith.constant 8.000000e+00 : f32
    %32 = vector.broadcast %cst_20 : f32 to vector<32x1xf32>
    %33 = arith.divf %31, %32 : vector<32x1xf32>
    %34 = vector.broadcast %1 : f32 to vector<32x1xf32>
    %35 = arith.mulf %34, %33 : vector<32x1xf32>
    %cst_21 = arith.constant 1.000000e+00 : f32
    %36 = arith.subf %cst_21, %1 : f32
    %c0_22 = arith.constant 0 : index
    %c0_23 = arith.constant 0 : index
    %37 = vector.load %arg7[%c0_22, %c0_23] : memref<32x8xf32, #tpu.memory_space<vmem>>, vector<32x8xf32>
    %cst_24 = arith.constant dense<0.000000e+00> : vector<32xf32>
    %38 = vector.multi_reduction <add>, %37, %cst_24 [1] : vector<32x8xf32> to vector<32xf32>
    %39 = vector.shape_cast %38 : vector<32xf32> to vector<32x1xf32>
    %cst_25 = arith.constant 8.000000e+00 : f32
    %40 = vector.broadcast %cst_25 : f32 to vector<32x1xf32>
    %41 = arith.divf %39, %40 : vector<32x1xf32>
    %42 = vector.broadcast %36 : f32 to vector<32x1xf32>
    %43 = arith.mulf %42, %41 : vector<32x1xf32>
    %44 = arith.addf %35, %43 : vector<32x1xf32>
    %c0_26 = arith.constant 0 : index
    %c0_27 = arith.constant 0 : index
    %45 = vector.load %arg10[%c0_26, %c0_27] : memref<8x32xf32, #tpu.memory_space<vmem>>, vector<8x32xf32>
    %cst_28 = arith.constant dense<0.000000e+00> : vector<8x1xf32>
    %46 = tpu.matmul %45, %44, %cst_28 {dimension_numbers = #tpu.dot_dimension_numbers<[1], [0], [0], [1], [0, 0, 1, 1], [], []>} : vector<8x32xf32>, vector<32x1xf32>, vector<8x1xf32> -> vector<8x1xf32>
    %c0_29 = arith.constant 0 : index
    %c0_30 = arith.constant 0 : index
    %47 = vector.load %arg11[%c0_29, %c0_30] : memref<8x1xf32, #tpu.memory_space<vmem>>, vector<8x1xf32>
    %48 = arith.addf %46, %47 : vector<8x1xf32>
    %49 = vector.broadcast %48 : vector<8x1xf32> to vector<8x128xf32>
    %50 = arith.addf %28, %49 : vector<8x128xf32>
    %c0_31 = arith.constant 0 : index
    %c0_32 = arith.constant 0 : index
    %51 = vector.load %arg12[%c0_31, %c0_32] : memref<8x128xf32, #tpu.memory_space<vmem>>, vector<8x128xf32>
    tpu.vector_store %arg12[%c0_31, %c0_32], %50 {strides = array<i32>} : memref<8x128xf32, #tpu.memory_space<vmem>>, vector<8x128xf32>,
    return
  }
  func.func @transform_0(%arg0: i32) -> i32 {
    %c0_i32 = arith.constant 0 : i32
    %c0_i32_0 = arith.constant 0 : i32
    return %c0_i32 : i32
  }
  func.func @transform_1(%arg0: i32) -> i32 {
    %c0_i32 = arith.constant 0 : i32
    %c0_i32_0 = arith.constant 0 : i32
    return %c0_i32 : i32
  }
  func.func @transform_2(%arg0: i32) -> (i32, i32) {
    %c0_i32 = arith.constant 0 : i32
    %c0_i32_0 = arith.constant 0 : i32
    return %c0_i32, %arg0 : i32, i32
  }
  func.func @transform_3(%arg0: i32) -> (i32, i32) {
    %c0_i32 = arith.constant 0 : i32
    %c0_i32_0 = arith.constant 0 : i32
    return %c0_i32, %arg0 : i32, i32
  }
  func.func @transform_4(%arg0: i32) -> (i32, i32) {
    %c0_i32 = arith.constant 0 : i32
    %c0_i32_0 = arith.constant 0 : i32
    return %c0_i32, %arg0 : i32, i32
  }
  func.func @transform_5(%arg0: i32) -> (i32, i32) {
    %c0_i32 = arith.constant 0 : i32
    %c0_i32_0 = arith.constant 0 : i32
    %c0_i32_1 = arith.constant 0 : i32
    return %c0_i32, %c0_i32_0 : i32, i32
  }
  func.func @transform_6(%arg0: i32) -> (i32, i32) {
    %c0_i32 = arith.constant 0 : i32
    %c0_i32_0 = arith.constant 0 : i32
    %c0_i32_1 = arith.constant 0 : i32
    return %c0_i32, %c0_i32_0 : i32, i32
  }
  func.func @transform_7(%arg0: i32) -> (i32, i32) {
    %c0_i32 = arith.constant 0 : i32
    %c0_i32_0 = arith.constant 0 : i32
    %c0_i32_1 = arith.constant 0 : i32
    return %c0_i32, %c0_i32_0 : i32, i32
  }
  func.func @transform_8(%arg0: i32) -> (i32, i32) {
    %c0_i32 = arith.constant 0 : i32
    %c0_i32_0 = arith.constant 0 : i32
    %c0_i32_1 = arith.constant 0 : i32
    return %c0_i32, %c0_i32_0 : i32, i32
  }
  func.func @transform_9(%arg0: i32) -> (i32, i32) {
    %c0_i32 = arith.constant 0 : i32
    %c0_i32_0 = arith.constant 0 : i32
    %c0_i32_1 = arith.constant 0 : i32
    return %c0_i32, %c0_i32_0 : i32, i32
  }
  func.func @transform_10(%arg0: i32) -> (i32, i32) {
    %c0_i32 = arith.constant 0 : i32
    %c0_i32_0 = arith.constant 0 : i32
    %c0_i32_1 = arith.constant 0 : i32
    return %c0_i32, %c0_i32_0 : i32, i32
  }
  func.func @transform_11(%arg0: i32) -> (i32, i32) {
    %c0_i32 = arith.constant 0 : i32
    %c0_i32_0 = arith.constant 0 : i32
    return %c0_i32, %arg0 : i32, i32
  }
}

</mosaic_0001>

<llo_original>
// kernel: tpu_custom_call.1
$region0: #{tpu_custom_call.1}
  #allocation0 [shape = 'u32[]', space=smem, size = 0x4, offset = 0x4, fixed_abs, tag = 'smem constant byte address 0x4 - core index']
  #allocation1 [shape = 'u32[72,128]{1,0:T(1,128)}', space=vmem, size = 0x9000, scoped, tag = 'internal scratch']
  #allocation2 [shape = 'f32[1]{0:T(128)S(6)}', space=smem, size = 0x200, scoped, tag = 'scoped memory for tpu_custom_call.1']
  %s0 = inlined_call_operand.<no memory space> [shape: f32[1], index: 0, kind: input, shape index: {}]
  %s1 = inlined_call_operand.vmem [shape: f32[2], index: 1, kind: input, shape index: {}]
  %s2 = inlined_call_operand.vmem [shape: bf16[4,256], index: 2, kind: input, shape index: {}]
  %s3 = inlined_call_operand.vmem [shape: bf16[4,256], index: 3, kind: input, shape index: {}]
  %s4 = inlined_call_operand.vmem [shape: bf16[4,256], index: 4, kind: input, shape index: {}]
  %s5 = inlined_call_operand.vmem [shape: f32[32,8], index: 5, kind: input, shape index: {}]
  %s6 = inlined_call_operand.vmem [shape: f32[32,8], index: 6, kind: input, shape index: {}]
  %s7 = inlined_call_operand.vmem [shape: f32[8,4], index: 7, kind: input, shape index: {}]
  %s8 = inlined_call_operand.vmem [shape: f32[8,4], index: 8, kind: input, shape index: {}]
  %s9 = inlined_call_operand.vmem [shape: f32[8,32], index: 9, kind: input, shape index: {}]
  %s10 = inlined_call_operand.vmem [shape: f32[8,1], index: 10, kind: input, shape index: {}]
  %s11 = inlined_call_operand.hbm [shape: f32[8,256], index: 11, kind: output, shape index: {}]
  %s12 = sld [smem:[#allocation0]]
  $region81: #{tpu_custom_call.1} parent=0
    _
  %s14 = ssub.s32 1, %s12
  %s15 = scalar_select 0, %s14, %s12
  %16 = sst [smem:[#allocation2]] %s0
  $region1: #{tpu_custom_call.1} parent=0
    #allocation3 [shape = 'u8[512]{0}', space=smem, size = 0x200, scoped, tag = 'input window, operand 1, single buffered']
    #allocation4 [shape = 's32[2]{0}', space=sflag, size = 0x8, scoped, tag = 'scoped memory for tpu_custom_call.1']
    #allocation5 [shape = 's32[2]{0}', space=sflag, size = 0x8, scoped, tag = 'scoped memory for tpu_custom_call.1']
    #allocation6 [shape = 'u8[8192]{0}', space=vmem, size = 0x2000, scoped, tag = 'output window, operand 0']
    %17 = vsyncpa [#allocation5], 0
    %18 = vsyncpa [#allocation4], 0
    %s19 = scalar_lea.sflag [#allocation4], 1
    %20 = vsyncpa %s19, 0
    loop: start=0, step=1, limit=4
    $region2: #{tpu_custom_call.1} parent=1 // loop_pre_header
      _
    $region3: #{tpu_custom_call.1} parent=1 // loop_header
      %s22 = sphi 0, %s26
      %p23 = scmp.ge.s32.totalorder %s22, 4
      %s30 = sphi 0, %s30
      %s32 = sphi 0, %s30
      %s33 = sphi 0, %s32
      %s47 = sphi 0, %s33
      %s51 = sphi 0, %s51
      %s53 = sphi 0, %s51
      %s54 = sphi 0, %s53
      %s68 = sphi 0, %s54
      %s74 = sphi 0, %s76
      %s77 = sphi 0, %s74
      %s78 = sphi 0, %s77
      %s94 = sphi 0, %s78
      %s100 = sphi 0, %s102
      %s103 = sphi 0, %s100
      %s104 = sphi 0, %s103
      %s120 = sphi 0, %s104
      %s126 = sphi 0, %s128
      %s129 = sphi 0, %s126
      %s130 = sphi 0, %s129
      %s146 = sphi 0, %s130
      %s150 = sphi 0, %s150
      %s152 = sphi 0, %s150
      %s153 = sphi 0, %s152
      %s167 = sphi 0, %s153
      %s171 = sphi 0, %s171
      %s173 = sphi 0, %s171
      %s174 = sphi 0, %s173
      %s188 = sphi 0, %s174
      %s192 = sphi 0, %s192
      %s194 = sphi 0, %s192
      %s195 = sphi 0, %s194
      %s209 = sphi 0, %s195
      %s213 = sphi 0, %s213
      %s215 = sphi 0, %s213
      %s216 = sphi 0, %s215
      %s230 = sphi 0, %s216
      %s234 = sphi 0, %s234
      %s236 = sphi 0, %s234
      %s237 = sphi 0, %s236
      %s251 = sphi 0, %s237
      %s255 = sphi 0, %s255
      %s257 = sphi 0, %s255
      %s258 = sphi 0, %s257
      %s272 = sphi 0, %s258
      %s278 = sphi 0, %s280
      %s281 = sphi 0, %s278
      %s282 = sphi 0, %s281
      %s298 = sphi 0, %s282
    $region4: #{tpu_custom_call.1} parent=1 // loop_header_branch
      %25 = sbr.rel (%p23) target = $region8
    $region5: #{tpu_custom_call.1} parent=1 // loop_body
      %s27 = ssub.s32 %s22, 1
      %s28 = ssub.s32 %s22, 2
      %s29 = sadd.s32 %s22, 1
      %s31 = sadd.s32 %s30, 1
      %p34 = scmp.eq.s32.totalorder %s22, 1
      %p35 = scmp.ne.s32.totalorder %s30, %s32
      %p36 = scmp.eq.s32.totalorder %s22, 0
      %p37 = por %p35, %p36
      %p38 = scmp.ne.s32.totalorder %s30, %s32
      %p39 = scmp.eq.s32.totalorder %s27, 1
      %p40 = por %p38, %p39
      %p41 = scmp.ne.s32.totalorder %s32, %s33
      %p42 = scmp.eq.s32.totalorder %s27, 0
      %p43 = por %p41, %p42
      %p44 = scmp.ne.s32.totalorder %s32, %s33
      %p45 = scmp.eq.s32.totalorder %s28, 1
      %p46 = por %p44, %p45
      %p48 = scmp.ne.s32.totalorder %s33, %s47
      %p49 = scmp.eq.s32.totalorder %s28, 0
      %p50 = por %p48, %p49
      %s52 = sadd.s32 %s51, 1
      %p55 = scmp.eq.s32.totalorder %s22, 1
      %p56 = scmp.ne.s32.totalorder %s51, %s53
      %p57 = scmp.eq.s32.totalorder %s22, 0
      %p58 = por %p56, %p57
      %p59 = scmp.ne.s32.totalorder %s51, %s53
      %p60 = scmp.eq.s32.totalorder %s27, 1
      %p61 = por %p59, %p60
      %p62 = scmp.ne.s32.totalorder %s53, %s54
      %p63 = scmp.eq.s32.totalorder %s27, 0
      %p64 = por %p62, %p63
      %p65 = scmp.ne.s32.totalorder %s53, %s54
      %p66 = scmp.eq.s32.totalorder %s28, 1
      %p67 = por %p65, %p66
      %p69 = scmp.ne.s32.totalorder %s54, %s68
      %p70 = scmp.eq.s32.totalorder %s28, 0
      %p71 = por %p69, %p70
      %s72 = ssub.s32 %s22, %s29
      %p73 = scmp.eq.s32.totalorder %s72, 0
      %s75 = sadd.s32 %s74, 1
      %s76 = scalar_select %p73, %s74, %s75
      %p79 = pneg %p73
      %p80 = scmp.eq.s32.totalorder %s22, 1
      %p81 = por %p79, %p80
      %p82 = scmp.ne.s32.totalorder %s74, %s77
      %p83 = scmp.eq.s32.totalorder %s22, 0
      %p84 = por %p82, %p83
      %p85 = scmp.ne.s32.totalorder %s74, %s77
      %p86 = scmp.eq.s32.totalorder %s27, 1
      %p87 = por %p85, %p86
      %p88 = scmp.ne.s32.totalorder %s77, %s78
      %p89 = scmp.eq.s32.totalorder %s27, 0
      %p90 = por %p88, %p89
      %p91 = scmp.ne.s32.totalorder %s77, %s78
      %p92 = scmp.eq.s32.totalorder %s28, 1
      %p93 = por %p91, %p92
      %p95 = scmp.ne.s32.totalorder %s78, %s94
      %p96 = scmp.eq.s32.totalorder %s28, 0
      %p97 = por %p95, %p96
      %s98 = ssub.s32 %s22, %s29
      %p99 = scmp.eq.s32.totalorder %s98, 0
      %s101 = sadd.s32 %s100, 1
      %s102 = scalar_select %p99, %s100, %s101
      %p105 = pneg %p99
      %p106 = scmp.eq.s32.totalorder %s22, 1
      %p107 = por %p105, %p106
      %p108 = scmp.ne.s32.totalorder %s100, %s103
      %p109 = scmp.eq.s32.totalorder %s22, 0
      %p110 = por %p108, %p109
      %p111 = scmp.ne.s32.totalorder %s100, %s103
      %p112 = scmp.eq.s32.totalorder %s27, 1
      %p113 = por %p111, %p112
      %p114 = scmp.ne.s32.totalorder %s103, %s104
      %p115 = scmp.eq.s32.totalorder %s27, 0
      %p116 = por %p114, %p115
      %p117 = scmp.ne.s32.totalorder %s103, %s104
      %p118 = scmp.eq.s32.totalorder %s28, 1
      %p119 = por %p117, %p118
      %p121 = scmp.ne.s32.totalorder %s104, %s120
      %p122 = scmp.eq.s32.totalorder %s28, 0
      %p123 = por %p121, %p122
      %s124 = ssub.s32 %s22, %s29
      %p125 = scmp.eq.s32.totalorder %s124, 0
      %s127 = sadd.s32 %s126, 1
      %s128 = scalar_select %p125, %s126, %s127
      %p131 = pneg %p125
      %p132 = scmp.eq.s32.totalorder %s22, 1
      %p133 = por %p131, %p132
      %p134 = scmp.ne.s32.totalorder %s126, %s129
      %p135 = scmp.eq.s32.totalorder %s22, 0
      %p136 = por %p134, %p135
      %p137 = scmp.ne.s32.totalorder %s126, %s129
      %p138 = scmp.eq.s32.totalorder %s27, 1
      %p139 = por %p137, %p138
      %p140 = scmp.ne.s32.totalorder %s129, %s130
      %p141 = scmp.eq.s32.totalorder %s27, 0
      %p142 = por %p140, %p141
      %p143 = scmp.ne.s32.totalorder %s129, %s130
      %p144 = scmp.eq.s32.totalorder %s28, 1
      %p145 = por %p143, %p144
      %p147 = scmp.ne.s32.totalorder %s130, %s146
      %p148 = scmp.eq.s32.totalorder %s28, 0
      %p149 = por %p147, %p148
      %s151 = sadd.s32 %s150, 1
      %p154 = scmp.eq.s32.totalorder %s22, 1
      %p155 = scmp.ne.s32.totalorder %s150, %s152
      %p156 = scmp.eq.s32.totalorder %s22, 0
      %p157 = por %p155, %p156
      %p158 = scmp.ne.s32.totalorder %s150, %s152
      %p159 = scmp.eq.s32.totalorder %s27, 1
      %p160 = por %p158, %p159
      %p161 = scmp.ne.s32.totalorder %s152, %s153
      %p162 = scmp.eq.s32.totalorder %s27, 0
      %p163 = por %p161, %p162
      %p164 = scmp.ne.s32.totalorder %s152, %s153
      %p165 = scmp.eq.s32.totalorder %s28, 1
      %p166 = por %p164, %p165
      %p168 = scmp.ne.s32.totalorder %s153, %s167
      %p169 = scmp.eq.s32.totalorder %s28, 0
      %p170 = por %p168, %p169
      %s172 = sadd.s32 %s171, 1
      %p175 = scmp.eq.s32.totalorder %s22, 1
      %p176 = scmp.ne.s32.totalorder %s171, %s173
      %p177 = scmp.eq.s32.totalorder %s22, 0
      %p178 = por %p176, %p177
      %p179 = scmp.ne.s32.totalorder %s171, %s173
      %p180 = scmp.eq.s32.totalorder %s27, 1
      %p181 = por %p179, %p180
      %p182 = scmp.ne.s32.totalorder %s173, %s174
      %p183 = scmp.eq.s32.totalorder %s27, 0
      %p184 = por %p182, %p183
      %p185 = scmp.ne.s32.totalorder %s173, %s174
      %p186 = scmp.eq.s32.totalorder %s28, 1
      %p187 = por %p185, %p186
      %p189 = scmp.ne.s32.totalorder %s174, %s188
      %p190 = scmp.eq.s32.totalorder %s28, 0
      %p191 = por %p189, %p190
      %s193 = sadd.s32 %s192, 1
      %p196 = scmp.eq.s32.totalorder %s22, 1
      %p197 = scmp.ne.s32.totalorder %s192, %s194
      %p198 = scmp.eq.s32.totalorder %s22, 0
      %p199 = por %p197, %p198
      %p200 = scmp.ne.s32.totalorder %s192, %s194
      %p201 = scmp.eq.s32.totalorder %s27, 1
      %p202 = por %p200, %p201
      %p203 = scmp.ne.s32.totalorder %s194, %s195
      %p204 = scmp.eq.s32.totalorder %s27, 0
      %p205 = por %p203, %p204
      %p206 = scmp.ne.s32.totalorder %s194, %s195
      %p207 = scmp.eq.s32.totalorder %s28, 1
      %p208 = por %p206, %p207
      %p210 = scmp.ne.s32.totalorder %s195, %s209
      %p211 = scmp.eq.s32.totalorder %s28, 0
      %p212 = por %p210, %p211
      %s214 = sadd.s32 %s213, 1
      %p217 = scmp.eq.s32.totalorder %s22, 1
      %p218 = scmp.ne.s32.totalorder %s213, %s215
      %p219 = scmp.eq.s32.totalorder %s22, 0
      %p220 = por %p218, %p219
      %p221 = scmp.ne.s32.totalorder %s213, %s215
      %p222 = scmp.eq.s32.totalorder %s27, 1
      %p223 = por %p221, %p222
      %p224 = scmp.ne.s32.totalorder %s215, %s216
      %p225 = scmp.eq.s32.totalorder %s27, 0
      %p226 = por %p224, %p225
      %p227 = scmp.ne.s32.totalorder %s215, %s216
      %p228 = scmp.eq.s32.totalorder %s28, 1
      %p229 = por %p227, %p228
      %p231 = scmp.ne.s32.totalorder %s216, %s230
      %p232 = scmp.eq.s32.totalorder %s28, 0
      %p233 = por %p231, %p232
      %s235 = sadd.s32 %s234, 1
      %p238 = scmp.eq.s32.totalorder %s22, 1
      %p239 = scmp.ne.s32.totalorder %s234, %s236
      %p240 = scmp.eq.s32.totalorder %s22, 0
      %p241 = por %p239, %p240
      %p242 = scmp.ne.s32.totalorder %s234, %s236
      %p243 = scmp.eq.s32.totalorder %s27, 1
      %p244 = por %p242, %p243
      %p245 = scmp.ne.s32.totalorder %s236, %s237
      %p246 = scmp.eq.s32.totalorder %s27, 0
      %p247 = por %p245, %p246
      %p248 = scmp.ne.s32.totalorder %s236, %s237
      %p249 = scmp.eq.s32.totalorder %s28, 1
      %p250 = por %p248, %p249
      %p252 = scmp.ne.s32.totalorder %s237, %s251
      %p253 = scmp.eq.s32.totalorder %s28, 0
      %p254 = por %p252, %p253
      %s256 = sadd.s32 %s255, 1
      %p259 = scmp.eq.s32.totalorder %s22, 1
      %p260 = scmp.ne.s32.totalorder %s255, %s257
      %p261 = scmp.eq.s32.totalorder %s22, 0
      %p262 = por %p260, %p261
      %p263 = scmp.ne.s32.totalorder %s255, %s257
      %p264 = scmp.eq.s32.totalorder %s27, 1
      %p265 = por %p263, %p264
      %p266 = scmp.ne.s32.totalorder %s257, %s258
      %p267 = scmp.eq.s32.totalorder %s27, 0
      %p268 = por %p266, %p267
      %p269 = scmp.ne.s32.totalorder %s257, %s258
      %p270 = scmp.eq.s32.totalorder %s28, 1
      %p271 = por %p269, %p270
      %p273 = scmp.ne.s32.totalorder %s258, %s272
      %p274 = scmp.eq.s32.totalorder %s28, 0
      %p275 = por %p273, %p274
      %s276 = ssub.s32 %s22, %s29
      %p277 = scmp.eq.s32.totalorder %s276, 0
      %s279 = sadd.s32 %s278, 1
      %s280 = scalar_select %p277, %s278, %s279
      %p283 = pneg %p277
      %p284 = scmp.eq.s32.totalorder %s22, 1
      %p285 = por %p283, %p284
      %p286 = scmp.ne.s32.totalorder %s278, %s281
      %p287 = scmp.eq.s32.totalorder %s22, 0
      %p288 = por %p286, %p287
      %p289 = scmp.ne.s32.totalorder %s278, %s281
      %p290 = scmp.eq.s32.totalorder %s27, 1
      %p291 = por %p289, %p290
      %p292 = scmp.ne.s32.totalorder %s281, %s282
      %p293 = scmp.eq.s32.totalorder %s27, 0
      %p294 = por %p292, %p293
      %p295 = scmp.ne.s32.totalorder %s281, %s282
      %p296 = scmp.eq.s32.totalorder %s28, 1
      %p297 = por %p295, %p296
      %p299 = scmp.ne.s32.totalorder %s282, %s298
      %p300 = scmp.eq.s32.totalorder %s28, 0
      %p301 = por %p299, %p300
      %p302 = scmp.le.s32.totalorder 1, %s22
      %p303 = scmp.lt.s32.totalorder %s22, 3
      %p304 = pnand %p302, %p303
      %p305 = pneg %p304
      // Predicated region
      $region9: #{tpu_custom_call.1} parent=5 // pred_check
        _
      $region10: #{tpu_custom_call.1} parent=5 // pred_check_branch
        %307 = sbr.rel (%p304) target = $region12
      $region11: #{tpu_custom_call.1} parent=5 // pred_region
        %s308 = ssub.s32 %s22, 1
        // Predicated region
        $region13: #{tpu_custom_call.1} parent=11 // pred_check
          %p309 = pneg %p43
        $region14: #{tpu_custom_call.1} parent=11 // pred_check_branch
          %311 = sbr.rel (%p309) target = $region16
        $region15: #{tpu_custom_call.1} parent=11 // pred_region
          _
        $region16: #{tpu_custom_call.1} parent=11 // pred_fallthru
          _
        // Predicated region
        $region17: #{tpu_custom_call.1} parent=11 // pred_check
          %p312 = pneg %p64
        $region18: #{tpu_custom_call.1} parent=11 // pred_check_branch
          %314 = sbr.rel (%p312) target = $region20
        $region19: #{tpu_custom_call.1} parent=11 // pred_region
          %316 = vsyncadd [#allocation5], 0
          %s318 = sshll.u32 %s1, 4
          %s319 = int_to_ptr.vmem [resolvable:$true] %s318
          %321 = dma.vmem_to_smem %s319, 16, [#allocation3], [#allocation5]
        $region20: #{tpu_custom_call.1} parent=11 // pred_fallthru
          _
        // Predicated region
        $region21: #{tpu_custom_call.1} parent=11 // pred_check
          %p322 = pneg %p163
        $region22: #{tpu_custom_call.1} parent=11 // pred_check_branch
          %324 = sbr.rel (%p322) target = $region24
        $region23: #{tpu_custom_call.1} parent=11 // pred_region
          _
        $region24: #{tpu_custom_call.1} parent=11 // pred_fallthru
          _
        // Predicated region
        $region25: #{tpu_custom_call.1} parent=11 // pred_check
          %p325 = pneg %p184
        $region26: #{tpu_custom_call.1} parent=11 // pred_check_branch
          %327 = sbr.rel (%p325) target = $region28
        $region27: #{tpu_custom_call.1} parent=11 // pred_region
          _
        $region28: #{tpu_custom_call.1} parent=11 // pred_fallthru
          _
        // Predicated region
        $region29: #{tpu_custom_call.1} parent=11 // pred_check
          %p328 = pneg %p205
        $region30: #{tpu_custom_call.1} parent=11 // pred_check_branch
          %330 = sbr.rel (%p328) target = $region32
        $region31: #{tpu_custom_call.1} parent=11 // pred_region
          _
        $region32: #{tpu_custom_call.1} parent=11 // pred_fallthru
          _
        // Predicated region
        $region33: #{tpu_custom_call.1} parent=11 // pred_check
          %p331 = pneg %p226
        $region34: #{tpu_custom_call.1} parent=11 // pred_check_branch
          %333 = sbr.rel (%p331) target = $region36
        $region35: #{tpu_custom_call.1} parent=11 // pred_region
          _
        $region36: #{tpu_custom_call.1} parent=11 // pred_fallthru
          _
        // Predicated region
        $region37: #{tpu_custom_call.1} parent=11 // pred_check
          %p334 = pneg %p247
        $region38: #{tpu_custom_call.1} parent=11 // pred_check_branch
          %336 = sbr.rel (%p334) target = $region40
        $region39: #{tpu_custom_call.1} parent=11 // pred_region
          _
        $region40: #{tpu_custom_call.1} parent=11 // pred_fallthru
          _
        // Predicated region
        $region41: #{tpu_custom_call.1} parent=11 // pred_check
          %p337 = pneg %p268
        $region42: #{tpu_custom_call.1} parent=11 // pred_check_branch
          %339 = sbr.rel (%p337) target = $region44
        $region43: #{tpu_custom_call.1} parent=11 // pred_region
          _
        $region44: #{tpu_custom_call.1} parent=11 // pred_fallthru
          _
      $region12: #{tpu_custom_call.1} parent=5 // pred_fallthru
        _
      %p340 = scmp.lt.s32.totalorder %s22, 2
      // Predicated region
      $region45: #{tpu_custom_call.1} parent=5 // pred_check
        %p341 = pneg %p340
      $region46: #{tpu_custom_call.1} parent=5 // pred_check_branch
        %343 = sbr.rel (%p341) target = $region48
      $region47: #{tpu_custom_call.1} parent=5 // pred_region
        // Predicated region
        $region49: #{tpu_custom_call.1} parent=47 // pred_check
          %p344 = pneg %p84
        $region50: #{tpu_custom_call.1} parent=47 // pred_check_branch
          %346 = sbr.rel (%p344) target = $region52
        $region51: #{tpu_custom_call.1} parent=47 // pred_region
          %p347 = scmp.lt.s32.totalorder %s22, 1
          %s348 = scalar_select %p347, %s22, 1
          %s349 = smul.addr %s348, 2
          %s350 = scalar_lea.vmem %s2, %s349
        $region52: #{tpu_custom_call.1} parent=47 // pred_fallthru
          _
        // Predicated region
        $region53: #{tpu_custom_call.1} parent=47 // pred_check
          %p351 = pneg %p110
        $region54: #{tpu_custom_call.1} parent=47 // pred_check_branch
          %353 = sbr.rel (%p351) target = $region56
        $region55: #{tpu_custom_call.1} parent=47 // pred_region
          %p354 = scmp.lt.s32.totalorder %s22, 1
          %s355 = scalar_select %p354, %s22, 1
          %s356 = smul.addr %s355, 2
          %s357 = scalar_lea.vmem %s3, %s356
        $region56: #{tpu_custom_call.1} parent=47 // pred_fallthru
          _
        // Predicated region
        $region57: #{tpu_custom_call.1} parent=47 // pred_check
          %p358 = pneg %p136
        $region58: #{tpu_custom_call.1} parent=47 // pred_check_branch
          %360 = sbr.rel (%p358) target = $region60
        $region59: #{tpu_custom_call.1} parent=47 // pred_region
          %p361 = scmp.lt.s32.totalorder %s22, 1
          %s362 = scalar_select %p361, %s22, 1
          %s363 = smul.addr %s362, 2
          %s364 = scalar_lea.vmem %s4, %s363
        $region60: #{tpu_custom_call.1} parent=47 // pred_fallthru
          _
      $region48: #{tpu_custom_call.1} parent=5 // pred_fallthru
        _
      %p365 = scmp.le.s32.totalorder 1, %s22
      %p366 = scmp.lt.s32.totalorder %s22, 3
      %p367 = pnand %p365, %p366
      %p368 = pneg %p367
      // Predicated region
      $region61: #{tpu_custom_call.1} parent=5 // pred_check
        _
      $region62: #{tpu_custom_call.1} parent=5 // pred_check_branch
        %370 = sbr.rel (%p367) target = $region64
      $region63: #{tpu_custom_call.1} parent=5 // pred_region
        %s371 = ssub.s32 %s22, 1
        // Predicated region
        $region65: #{tpu_custom_call.1} parent=63 // pred_check
          %p372 = pneg %p64
        $region66: #{tpu_custom_call.1} parent=63 // pred_check_branch
          %374 = sbr.rel (%p372) target = $region68
        $region67: #{tpu_custom_call.1} parent=63 // pred_region
          %376 = dma.done [#allocation5], 16
        $region68: #{tpu_custom_call.1} parent=63 // pred_fallthru
          _
        %377 = sfence
        %p378 = pneg %p43
        %p379 = pneg %p40
        %p380 = pneg %p64
        %p381 = pneg %p61
        %p382 = scmp.lt.s32.totalorder %s27, 1
        %s383 = scalar_select %p382, %s27, 1
        %s384 = smul.addr %s383, 2
        %s385 = scalar_lea.vmem %s2, %s384
        %p386 = pneg %p90
        %p387 = pneg %p87
        %p388 = scmp.lt.s32.totalorder %s27, 1
        %s389 = scalar_select %p388, %s27, 1
        %s390 = smul.addr %s389, 2
        %s391 = scalar_lea.vmem %s3, %s390
        %p392 = pneg %p116
        %p393 = pneg %p113
        %p394 = scmp.lt.s32.totalorder %s27, 1
        %s395 = scalar_select %p394, %s27, 1
        %s396 = smul.addr %s395, 2
        %s397 = scalar_lea.vmem %s4, %s396
        %p398 = pneg %p142
        %p399 = pneg %p139
        %p400 = pneg %p163
        %p401 = pneg %p160
        %p402 = pneg %p184
        %p403 = pneg %p181
        %p404 = pneg %p205
        %p405 = pneg %p202
        %p406 = pneg %p226
        %p407 = pneg %p223
        %p408 = pneg %p247
        %p409 = pneg %p244
        %p410 = pneg %p268
        %p411 = pneg %p265
        %p412 = pneg %p294
        %p413 = pneg %p291
        %s414 = sand.u32 %s281, 1
        %s415 = scalar_lea.sflag [#allocation4], %s414
        %s416 = sand.u32 %s281, 1
        %s417 = smul.addr %s416, 8
        %s418 = scalar_lea.vmem [#allocation6], %s417
        %p419 = scmp.lt.s32.totalorder %s27, 1
        %s420 = scalar_select %p419, %s27, 1
        %s421 = smul.addr %s420, 2
        %s422 = scalar_lea.vmem %s2, %s421
        %p423 = scmp.lt.s32.totalorder %s27, 1
        %s424 = scalar_select %p423, %s27, 1
        %s425 = smul.addr %s424, 2
        %s426 = scalar_lea.vmem %s3, %s425
        %p427 = scmp.lt.s32.totalorder %s27, 1
        %s428 = scalar_select %p427, %s27, 1
        %s429 = smul.addr %s428, 2
        %s430 = scalar_lea.vmem %s4, %s429
        %s432 = sld [smem:[#allocation2]]
        %s433 = sld [smem:[#allocation3]]
        %s434 = sld [smem:[#allocation3 + $0x1]]
        %s435 = smul.f32 %s432, %s432
        %s436 = sadd.f32 %s435, 1.0
        %v437 = vstv %s436
        %v438 = vrsqrt.pop %v437
        %v439 = vmul.f32 %v438, %v437
        %v440 = vmul.f32 %v439, %v438
        %v441 = vmul.f32 0.5, %v440
        %v442 = vsub.f32 1.5, %v441
        %v443 = vmul.f32 %v438, %v442
        %vm444 = vweird.f32 %v437
        %vm445 = vweird.f32 %v438
        %vm446 = vmor %vm444, %vm445
        %v447 = vsel %vm446, %v438, %v443
        %s448 = vtos %v447
        %v449 = vld [vmem:[%s7] sm:$0xff]
        %v450 = vstv %s448
        %v451 = vmul.f32 %v450, %v449
        %v452 = vpack.c.bf16 %v451, %v451
        %s453 = smul.f32 %s448, %s434
        %v454 = vld [vmem:[%s8] sm:$0xff]
        %v455 = vstv %s453
        %v456 = vmul.f32 %v455, %v454
        %v457 = vpack.c.bf16 %v456, %v456
        %s458 = ssub.f32 1.0, %s434
        %s459 = smul.f32 %s448, %s458
        %v460 = vstv %s459
        %v461 = vmul.f32 %v460, %v454
        %v462 = vpack.c.bf16 %v461, %v461
        %v463 = vld [vmem:[%s422] sm:$0x3]
        %v464 = vld [vmem:[%s426] sm:$0x3]
        %vm465 = vcmask 31744
        %v467 = vsel %vm465, %v457, 0
        %vm469 = vcmask 1041408
        %v471 = vsel %vm469, %v464, 0
        %473 = vmatpush.bf16.msra.mxu0 0
        %474 = vmatpush.bf16.msra.mxu0 0
        %475 = vmatpush.bf16.msra.mxu0 0
        %476 = vmatpush.bf16.msra.mxu0 0
        %477 = vmatpush.bf16.msra.mxu0 0
        %478 = vmatpush.bf16.msra.mxu0 0
        %479 = vmatpush.bf16.msra.mxu0 0
        %480 = vmatpush.bf16.msra.mxu0 %v471
        %481 = vmatmul.bf16.gmra.mxu0 %v467
        %v482 = vpop.f32.mrf.mxu0
        %v483 = vadd.f32 0.0, %v482
        %v484 = vpop.f32.mrf.mxu0
        %485 = vdwg.mxu0
        %v487 = vsel %vm465, %v452, 0
        %v490 = vsel %vm469, %v463, 0
        %492 = vmatpush.bf16.msra.mxu0 0
        %493 = vmatpush.bf16.msra.mxu0 0
        %494 = vmatpush.bf16.msra.mxu0 0
        %495 = vmatpush.bf16.msra.mxu0 0
        %496 = vmatpush.bf16.msra.mxu0 0
        %497 = vmatpush.bf16.msra.mxu0 0
        %498 = vmatpush.bf16.msra.mxu0 0
        %499 = vmatpush.bf16.msra.mxu0 %v490
        %500 = vmatmul.bf16.gmra.mxu0 %v487
        %v501 = vpop.f32.mrf.mxu0
        %v502 = vadd.f32 %v483, %v501
        %v503 = vpop.f32.mrf.mxu0
        %504 = vdwg.mxu0
        %v505 = vld [vmem:[%s430] sm:$0x3]
        %v507 = vsel %vm465, %v462, 0
        %v510 = vsel %vm469, %v505, 0
        %512 = vmatpush.bf16.msra.mxu0 0
        %513 = vmatpush.bf16.msra.mxu0 0
        %514 = vmatpush.bf16.msra.mxu0 0
        %515 = vmatpush.bf16.msra.mxu0 0
        %516 = vmatpush.bf16.msra.mxu0 0
        %517 = vmatpush.bf16.msra.mxu0 0
        %518 = vmatpush.bf16.msra.mxu0 0
        %519 = vmatpush.bf16.msra.mxu0 %v510
        %520 = vmatmul.bf16.gmra.mxu0 %v507
        %v521 = vpop.f32.mrf.mxu0
        %v522 = vadd.f32 0.0, %v521
        %v523 = vpop.f32.mrf.mxu0
        %524 = vdwg.mxu0
        %v525 = vadd.f32 %v502, %v522
        %v526 = vld [vmem:[%s5] sm:$0xff]
        %v527 = vld [vmem:[%s5 + $0x8] sm:$0xff]
        %v528 = vld [vmem:[%s5 + $0x10] sm:$0xff]
        %v529 = vld [vmem:[%s5 + $0x18] sm:$0xff]
        %vm530 = vcmask 64512
        %v531 = vsel %vm530, %v526, 0.0
        %532 = vadd.xlane.f32.xlu0 %v531
        %v533 = vpop.xlane.xlu0 %532
        %v534 = vsel %vm530, %v527, 0.0
        %535 = vadd.xlane.f32.xlu0 %v534
        %v536 = vpop.xlane.xlu0 %535
        %v537 = vsel %vm530, %v528, 0.0
        %538 = vadd.xlane.f32.xlu0 %v537
        %v539 = vpop.xlane.xlu0 %538
        %v540 = vsel %vm530, %v529, 0.0
        %541 = vadd.xlane.f32.xlu0 %v540
        %v542 = vpop.xlane.xlu0 %541
        %v543 = vrcp.pop 8.0
        %v544 = vmul.f32 8.0, %v543
        %v545 = vsub.f32 1.0, %v544
        %v546 = vmul.f32 %v543, %v545
        %v547 = vadd.f32 %v543, %v546
        %vm548 = vweird.f32 %v543
        %v549 = vsel %vm548, %v543, %v547
        %v550 = vmul.f32 %v533, %v549
        %v551 = vmul.f32 %v536, %v549
        %v552 = vmul.f32 %v539, %v549
        %v553 = vmul.f32 %v542, %v549
        %v554 = vstv %s433
        %v555 = vmul.f32 %v554, %v550
        %v556 = vmul.f32 %v554, %v551
        %v557 = vmul.f32 %v554, %v552
        %v558 = vmul.f32 %v554, %v553
        %s559 = ssub.f32 1.0, %s433
        %v560 = vld [vmem:[%s6] sm:$0xff]
        %v561 = vld [vmem:[%s6 + $0x8] sm:$0xff]
        %v562 = vld [vmem:[%s6 + $0x10] sm:$0xff]
        %v563 = vld [vmem:[%s6 + $0x18] sm:$0xff]
        %v564 = vsel %vm530, %v560, 0.0
        %565 = vadd.xlane.f32.xlu0 %v564
        %v566 = vpop.xlane.xlu0 %565
        %v567 = vsel %vm530, %v561, 0.0
        %568 = vadd.xlane.f32.xlu0 %v567
        %v569 = vpop.xlane.xlu0 %568
        %v570 = vsel %vm530, %v562, 0.0
        %571 = vadd.xlane.f32.xlu0 %v570
        %v572 = vpop.xlane.xlu0 %571
        %v573 = vsel %vm530, %v563, 0.0
        %574 = vadd.xlane.f32.xlu0 %v573
        %v575 = vpop.xlane.xlu0 %574
        %v576 = vmul.f32 %v566, %v549
        %v577 = vmul.f32 %v569, %v549
        %v578 = vmul.f32 %v572, %v549
        %v579 = vmul.f32 %v575, %v549
        %v580 = vstv %s559
        %v581 = vmul.f32 %v580, %v576
        %v582 = vmul.f32 %v580, %v577
        %v583 = vmul.f32 %v580, %v578
        %v584 = vmul.f32 %v580, %v579
        %v585 = vadd.f32 %v555, %v581
        %v586 = vadd.f32 %v556, %v582
        %v587 = vadd.f32 %v557, %v583
        %v588 = vadd.f32 %v558, %v584
        %v589 = vld [vmem:[%s9] sm:$0xff]
        %v590 = vld [vmem:[%s10] sm:$0xff]
        %vm591 = vcmask 261120
        %v593 = vsel %vm591, %v589, 0
        %595 = vmatpush.msra.mxu0 0.0
        %596 = vmatpush.msra.mxu0 0.0
        %597 = vmatpush.msra.mxu0 0.0
        %598 = vmatpush.msra.mxu0 0.0
        %599 = vmatpush.msra.mxu0 0.0
        %600 = vmatpush.msra.mxu0 0.0
        %601 = vmatpush.msra.mxu0 0.0
        %602 = vmatpush.msra.mxu0 0.0
        %603 = vmatpush.msra.mxu0 0.0
        %604 = vmatpush.msra.mxu0 0.0
        %605 = vmatpush.msra.mxu0 0.0
        %606 = vmatpush.msra.mxu0 0.0
        %607 = vmatpush.msra.mxu0 %v588
        %608 = vmatpush.msra.mxu0 %v587
        %609 = vmatpush.msra.mxu0 %v586
        %610 = vmatpush.msra.mxu0 %v585
        %611 = vmatmul.f32.gmra.mxu0 %v593
        %v612 = vpop.f32.mrf.mxu0
        %v613 = vadd.f32 %v590, %v612
        %614 = vdwg.mxu0
        %616 = vset.pattern.permute.xlu0 0
        %617 = vperm.xlu0 %616, %v613
        %v618 = vpop.permute.xlu0 %617
        %v620 = vadd.f32 %v525, %v618
        %621 = vst [vmem:[%s418] sm:$0xff] %v620
        %s622 = sand.u32 %s281, 1
        %s623 = scalar_lea.sflag [#allocation4], %s622
        %s624 = sand.u32 %s281, 1
        %s625 = smul.addr %s624, 8
        %s626 = scalar_lea.vmem [#allocation6], %s625
        // Predicated region
        $region69: #{tpu_custom_call.1} parent=63 // pred_check
          %p627 = pneg %p291
        $region70: #{tpu_custom_call.1} parent=63 // pred_check_branch
          %629 = sbr.rel (%p627) target = $region72
        $region71: #{tpu_custom_call.1} parent=63 // pred_region
          %631 = vsyncadd %s623, 0
          %s632 = smul.addr %s27, 8
          %s633 = scalar_lea.hbm %s11, %s632
          %s635 = sshll.u32 %s626, 4
          %s636 = int_to_ptr.vmem [resolvable:$true] %s635
          %s637 = sshll.u32 %s633, 4
          %s638 = int_to_ptr.hbm [resolvable:$true] %s637
          %640 = dma.vmem_to_hbm [thread:$0]  %s636, 128, %s638, %s623
        $region72: #{tpu_custom_call.1} parent=63 // pred_fallthru
          _
      $region64: #{tpu_custom_call.1} parent=5 // pred_fallthru
        _
      %p641 = scmp.le.s32.totalorder 2, %s22
      // Predicated region
      $region73: #{tpu_custom_call.1} parent=5 // pred_check
        %p642 = pneg %p641
      $region74: #{tpu_custom_call.1} parent=5 // pred_check_branch
        %644 = sbr.rel (%p642) target = $region76
      $region75: #{tpu_custom_call.1} parent=5 // pred_region
        %s645 = ssub.s32 %s22, 2
        // Predicated region
        $region77: #{tpu_custom_call.1} parent=75 // pred_check
          %p646 = pneg %p297
        $region78: #{tpu_custom_call.1} parent=75 // pred_check_branch
          %648 = sbr.rel (%p646) target = $region80
        $region79: #{tpu_custom_call.1} parent=75 // pred_region
          %s649 = sand.u32 %s282, 1
          %s650 = scalar_lea.sflag [#allocation4], %s649
          %s651 = sand.u32 %s282, 1
          %s652 = smul.addr %s651, 8
          %s653 = scalar_lea.vmem [#allocation6], %s652
          %655 = dma.done %s650, 128
        $region80: #{tpu_custom_call.1} parent=75 // pred_fallthru
          _
      $region76: #{tpu_custom_call.1} parent=5 // pred_fallthru
        _
    $region6: #{tpu_custom_call.1} parent=1 // loop_footer
      %s26 = sadd.s32 1, %s22
    $region7: #{tpu_custom_call.1} parent=1 // loop_footer_branch
      %21 = sbr.rel target = $region3
    $region8: #{tpu_custom_call.1} parent=1 // loop_exit
      _
    %656 = vsyncpa [#allocation4], 1
    %s657 = scalar_lea.sflag [#allocation4], 1
    %658 = vsyncpa %s657, 1
    %659 = vsyncpa [#allocation5], 1
    %s660 = scalar_lea.sflag [#allocation5], 1
    %661 = vsyncpa %s660, 1

</llo_original>
